<compile_context>
chip_gen: v7x
topology: tpu7x:2x2x1
jax: 0.10.0
libtpu: 0.0.40
codegen_flags: <defaults>
</compile_context>

<pallas_src>
import functools
import math

import jax
import jax.numpy as jnp
from jax import lax
from jax.experimental import pallas as pl
from jax.experimental.pallas import tpu as pltpu


def _layernorm_q_kernel(x_ref, w_ref, b_ref, o_ref, *, eps, inv_d):
    # x_ref: (TM, D) native dtype; w_ref/b_ref: (1, D) f32; o_ref: (TM, D) int8
    x = x_ref[...].astype(jnp.float32)
    # Single pass over the tile: one pair of cross-lane reductions, no
    # separate "centered" full-tile pass.
    s1 = jnp.sum(x, axis=-1, keepdims=True)
    s2 = jnp.sum(x * x, axis=-1, keepdims=True)
    mean = s1 * inv_d
    var = jnp.maximum(s2 * inv_d - mean * mean, 0.0)
    inv = lax.rsqrt(var + eps)
    y = (x - mean) * inv * w_ref[...] + b_ref[...]
    # torch.round / jnp.round both round-half-to-even, so semantics match.
    y = jnp.clip(jnp.round(y), -128.0, 127.0)
    o_ref[...] = y.astype(jnp.int8)


def layernorm_q(x, weight, bias, eps=1e-5, *, block_rows=512):
    """Quantized LayerNorm: int8 output of layer_norm(x, (D,), weight, bias, eps)."""
    orig_shape = x.shape
    D = orig_shape[-1]
    rows = math.prod(orig_shape[:-1])

    # Keep the input in its native dtype (no wrapper f32 upcast / HBM copy).
    x2 = x.reshape(rows, D)
    w2 = weight.reshape(1, D).astype(jnp.float32)
    b2 = bias.reshape(1, D).astype(jnp.float32)

    # Row tile: multiple of 32 (int8 sublane packing) when tiling; for small
    # inputs fall back to the full row count (block == full array is allowed).
    tm = max(32, (block_rows // 32) * 32)
    if rows <= tm:
        tm = rows
    grid = (pl.cdiv(rows, tm),)

    in_bytes = jnp.dtype(x2.dtype).itemsize
    # Double-buffered input tile + double-buffered int8 output tile + params.
    needed = 2 * tm * D * (in_bytes + 1) + 2 * D * 4
    vmem_limit = int(min(64 << 20, max(needed + (4 << 20), 16 << 20)))

    kernel = functools.partial(_layernorm_q_kernel, eps=float(eps), inv_d=1.0 / D)
    out = pl.pallas_call(
        kernel,
        out_shape=jax.ShapeDtypeStruct((rows, D), jnp.int8),
        grid=grid,
        in_specs=[
            pl.BlockSpec((tm, D), lambda r: (r, 0)),
            pl.BlockSpec((1, D), lambda r: (0, 0)),   # weight pinned
            pl.BlockSpec((1, D), lambda r: (0, 0)),   # bias pinned
        ],
        out_specs=pl.BlockSpec((tm, D), lambda r: (r, 0)),
        compiler_params=pltpu.CompilerParams(
            dimension_semantics=("parallel",),
            vmem_limit_bytes=vmem_limit,
        ),
        cost_estimate=pl.CostEstimate(
            flops=8 * rows * D,
            transcendentals=rows,
            bytes_accessed=rows * D * (in_bytes + 1) + 2 * D * 4,
        ),
    )(x2, w2, b2)
    return out.reshape(orig_shape)


class LayerNormQ:
    """JAX mirror of the PyTorch `_LayerNormQ` module."""

    def __init__(self, dim, eps=1e-5):
        self.input_scale = 1.0
        self.eps = eps
        # Deterministic init, exactly as in the PyTorch __init__.
        self.weight = jnp.ones((dim,), dtype=jnp.float32)
        self.bias = jnp.zeros((dim,), dtype=jnp.float32)

    def __call__(self, x):
        return layernorm_q(x, self.weight, self.bias, self.eps)


def _check(out, x, weight, bias, eps):
    """Compare against a two-pass fp32 reference, tolerating 1-LSB deltas only
    where the fp value sits right on a rounding boundary (single-pass vs
    two-pass variance can differ in the last ulp)."""
    xf = x.astype(jnp.float32)
    mean = jnp.mean(xf, axis=-1, keepdims=True)
    var = jnp.mean((xf - mean) ** 2, axis=-1, keepdims=True)
    ref_fp = (xf - mean) * lax.rsqrt(var + eps) * weight + bias
    ref = jnp.clip(jnp.round(ref_fp), -128.0, 127.0).astype(jnp.int8)
    assert out.dtype == jnp.int8
    assert out.shape == x.shape
    diff = jnp.abs(out.astype(jnp.int32) - ref.astype(jnp.int32))
    near_boundary = jnp.abs(ref_fp - jnp.floor(ref_fp) - 0.5) < 1e-3
    assert bool(jnp.all((diff == 0) | ((diff <= 1) & near_boundary)))


if __name__ == "__main__":
    # Small demo shapes consistent with the module (block == full array here).
    B, S, D = 2, 8, 32  # batch, seq, hidden
    key = jax.random.PRNGKey(0)
    x = jax.random.normal(key, (B, S, D), dtype=jnp.float32) * 3.0 + 0.5

    module = LayerNormQ(D, eps=1e-5)
    # Emulate `from_float` rescaling deterministically (weight/bias divided by
    # an output scale) so the int8 quantization is non-trivial.
    output_scale = 0.05
    module.weight = module.weight / output_scale
    module.bias = (jnp.arange(D, dtype=jnp.float32) * 0.01) / output_scale

    out = module(x)
    jax.block_until_ready(out)
    _check(out, x, module.weight, module.bias, module.eps)

    # Second call exercising the tiled path: bf16 input, rows not a multiple
    # of the 512-row tile (partial trailing block), D a multiple of 128.
    B2, S2, D2 = 4, 300, 128
    x2 = (jax.random.normal(jax.random.PRNGKey(0), (B2, S2, D2), dtype=jnp.float32)
          * 2.0 - 0.25).astype(jnp.bfloat16)
    module2 = LayerNormQ(D2, eps=1e-5)
    module2.weight = module2.weight * 12.0
    module2.bias = jnp.linspace(-3.0, 3.0, D2, dtype=jnp.float32)
    out2 = module2(x2)
    jax.block_until_ready(out2)
    _check(out2, x2, module2.weight, module2.bias, module2.eps)

    print("KERNEL_OK")
</pallas_src>

<mosaic_0001>
module attributes {stable_mosaic.version = 11 : i64} {
  func.func @_layernorm_q_kernel(%arg0: i32, %arg1: memref<16x32xf32, #tpu.memory_space<vmem>>, %arg2: memref<1x32xf32, #tpu.memory_space<vmem>>, %arg3: memref<1x32xf32, #tpu.memory_space<vmem>>, %arg4: memref<16x32xi8, #tpu.memory_space<vmem>>) attributes {dimension_semantics = [#tpu.dimension_semantics<parallel>], iteration_bounds = array<i64: 1>, scalar_prefetch = 0 : i64, scratch_operands = 0 : i64, tpu.core_type = #tpu.core_type<tc>, window_params = [{transform_indices = @transform_0, window_bounds = array<i64: 16, 32>}, {pipeline_mode = #tpu.pipeline_mode<synchronous>, transform_indices = @transform_1, window_bounds = array<i64: 1, 32>}, {pipeline_mode = #tpu.pipeline_mode<synchronous>, transform_indices = @transform_2, window_bounds = array<i64: 1, 32>}, {transform_indices = @transform_3, window_bounds = array<i64: 16, 32>}]} {
    %c0 = arith.constant 0 : index
    %c0_0 = arith.constant 0 : index
    %0 = vector.load %arg1[%c0, %c0_0] : memref<16x32xf32, #tpu.memory_space<vmem>>, vector<16x32xf32>
    %cst = arith.constant dense<0.000000e+00> : vector<16xf32>
    %1 = vector.multi_reduction <add>, %0, %cst [1] : vector<16x32xf32> to vector<16xf32>
    %2 = vector.shape_cast %1 : vector<16xf32> to vector<16x1xf32>
    %3 = arith.mulf %0, %0 : vector<16x32xf32>
    %cst_1 = arith.constant dense<0.000000e+00> : vector<16xf32>
    %4 = vector.multi_reduction <add>, %3, %cst_1 [1] : vector<16x32xf32> to vector<16xf32>
    %5 = vector.shape_cast %4 : vector<16xf32> to vector<16x1xf32>
    %cst_2 = arith.constant 3.125000e-02 : f32
    %6 = vector.broadcast %cst_2 : f32 to vector<16x1xf32>
    %7 = arith.mulf %2, %6 : vector<16x1xf32>
    %cst_3 = arith.constant 3.125000e-02 : f32
    %8 = vector.broadcast %cst_3 : f32 to vector<16x1xf32>
    %9 = arith.mulf %5, %8 : vector<16x1xf32>
    %10 = arith.mulf %7, %7 : vector<16x1xf32>
    %11 = arith.subf %9, %10 : vector<16x1xf32>
    %cst_4 = arith.constant 0.000000e+00 : f32
    %12 = vector.broadcast %cst_4 : f32 to vector<16x1xf32>
    %13 = arith.maximumf %11, %12 : vector<16x1xf32>
    %cst_5 = arith.constant 9.99999974E-6 : f32
    %14 = vector.broadcast %cst_5 : f32 to vector<16x1xf32>
    %15 = arith.addf %13, %14 : vector<16x1xf32>
    %16 = math.rsqrt %15 : vector<16x1xf32>
    %17 = vector.broadcast %7 : vector<16x1xf32> to vector<16x32xf32>
    %18 = arith.subf %0, %17 : vector<16x32xf32>
    %19 = vector.broadcast %16 : vector<16x1xf32> to vector<16x32xf32>
    %20 = arith.mulf %18, %19 : vector<16x32xf32>
    %c0_6 = arith.constant 0 : index
    %c0_7 = arith.constant 0 : index
    %21 = vector.load %arg2[%c0_6, %c0_7] : memref<1x32xf32, #tpu.memory_space<vmem>>, vector<1x32xf32>
    %22 = vector.broadcast %21 : vector<1x32xf32> to vector<16x32xf32>
    %23 = arith.mulf %20, %22 : vector<16x32xf32>
    %c0_8 = arith.constant 0 : index
    %c0_9 = arith.constant 0 : index
    %24 = vector.load %arg3[%c0_8, %c0_9] : memref<1x32xf32, #tpu.memory_space<vmem>>, vector<1x32xf32>
    %25 = vector.broadcast %24 : vector<1x32xf32> to vector<16x32xf32>
    %26 = arith.addf %23, %25 : vector<16x32xf32>
    %27 = math.roundeven %26 : vector<16x32xf32>
    %cst_10 = arith.constant -1.280000e+02 : f32
    %cst_11 = arith.constant 1.270000e+02 : f32
    %28 = vector.broadcast %cst_10 : f32 to vector<16x32xf32>
    %29 = arith.maximumf %28, %27 : vector<16x32xf32>
    %30 = vector.broadcast %cst_11 : f32 to vector<16x32xf32>
    %31 = arith.minimumf %30, %29 : vector<16x32xf32>
    %32 = arith.fptosi %31 : vector<16x32xf32> to vector<16x32xi8>
    %c0_12 = arith.constant 0 : index
    %c0_13 = arith.constant 0 : index
    %33 = vector.load %arg4[%c0_12, %c0_13] : memref<16x32xi8, #tpu.memory_space<vmem>>, vector<16x32xi8>
    tpu.vector_store %arg4[%c0_12, %c0_13], %32 {strides = array<i32>} : memref<16x32xi8, #tpu.memory_space<vmem>>, vector<16x32xi8>,
    return
  }
  func.func @transform_0(%arg0: i32) -> (i32, i32) {
    %c0_i32 = arith.constant 0 : i32
    %c0_i32_0 = arith.constant 0 : i32
    return %arg0, %c0_i32 : i32, i32
  }
  func.func @transform_1(%arg0: i32) -> (i32, i32) {
    %c0_i32 = arith.constant 0 : i32
    %c0_i32_0 = arith.constant 0 : i32
    %c0_i32_1 = arith.constant 0 : i32
    return %c0_i32, %c0_i32_0 : i32, i32
  }
  func.func @transform_2(%arg0: i32) -> (i32, i32) {
    %c0_i32 = arith.constant 0 : i32
    %c0_i32_0 = arith.constant 0 : i32
    %c0_i32_1 = arith.constant 0 : i32
    return %c0_i32, %c0_i32_0 : i32, i32
  }
  func.func @transform_3(%arg0: i32) -> (i32, i32) {
    %c0_i32 = arith.constant 0 : i32
    %c0_i32_0 = arith.constant 0 : i32
    return %arg0, %c0_i32 : i32, i32
  }
}

</mosaic_0001>

<llo_original>
// kernel: tpu_custom_call.1
$region0: #{tpu_custom_call.1}
  #allocation0 [shape = 'u32[]', space=smem, size = 0x4, offset = 0x4, fixed_abs, tag = 'smem constant byte address 0x4 - core index']
  #allocation1 [shape = 'u32[144,128]{1,0:T(1,128)}', space=vmem, size = 0x12000, scoped, tag = 'internal scratch']
  %s0 = inlined_call_operand.hbm [shape: f32[16,32], index: 0, kind: input, shape index: {}]
  %s1 = inlined_call_operand.vmem [shape: f32[1,32], index: 1, kind: input, shape index: {}]
  %s2 = inlined_call_operand.vmem [shape: f32[1,32], index: 2, kind: input, shape index: {}]
  %s3 = inlined_call_operand.hbm [shape: s8[16,32], index: 3, kind: output, shape index: {}]
  %s4 = sld [smem:[#allocation0]]
  $region26: #{tpu_custom_call.1} parent=0
    _
  %s6 = ssub.s32 1, %s4
  %s7 = scalar_select 0, %s6, %s4
  $region1: #{tpu_custom_call.1} parent=0
    #allocation2 [shape = 'u8[8192]{0}', space=vmem, size = 0x2000, scoped, tag = 'input window, operand 0, single buffered']
    #allocation3 [shape = 's32[1]{0}', space=sflag, size = 0x4, scoped, tag = 'scoped memory for tpu_custom_call.1']
    #allocation4 [shape = 's32[1]{0}', space=sflag, size = 0x4, scoped, tag = 'scoped memory for tpu_custom_call.1']
    #allocation5 [shape = 'u8[2048]{0}', space=vmem, size = 0x800, scoped, tag = 'output window, operand 0, single buffered']
    %8 = vsyncpa [#allocation3], 0
    %9 = vsyncpa [#allocation4], 0
    // Predicated region
    $region2: #{tpu_custom_call.1} parent=1 // pred_check
      _
    $region3: #{tpu_custom_call.1} parent=1 // pred_check_branch
      %11 = sbr.rel (0) target = $region5
    $region4: #{tpu_custom_call.1} parent=1 // pred_region
      %s13 = ssub.s32 256, 256
      %14 = vsyncadd [#allocation3], %s13
      %s15 = sshll.u32 [#allocation2], 4
      %s16 = int_to_ptr.vmem [resolvable:$true] %s15
      %21 = dma.hbm_to_vmem [thread:$0]  %s0, 256, %s16, [#allocation3], 128, 128, 8
    $region5: #{tpu_custom_call.1} parent=1 // pred_fallthru
      _
    // Predicated region
    $region6: #{tpu_custom_call.1} parent=1 // pred_check
      _
    $region7: #{tpu_custom_call.1} parent=1 // pred_check_branch
      %23 = sbr.rel (0) target = $region9
    $region8: #{tpu_custom_call.1} parent=1 // pred_region
      _
    $region9: #{tpu_custom_call.1} parent=1 // pred_fallthru
      _
    // Predicated region
    $region10: #{tpu_custom_call.1} parent=1 // pred_check
      _
    $region11: #{tpu_custom_call.1} parent=1 // pred_check_branch
      %25 = sbr.rel (0) target = $region13
    $region12: #{tpu_custom_call.1} parent=1 // pred_region
      _
    $region13: #{tpu_custom_call.1} parent=1 // pred_fallthru
      _
    // Predicated region
    $region14: #{tpu_custom_call.1} parent=1 // pred_check
      _
    $region15: #{tpu_custom_call.1} parent=1 // pred_check_branch
      %27 = sbr.rel (0) target = $region17
    $region16: #{tpu_custom_call.1} parent=1 // pred_region
      %28 = dma.done [#allocation3], 256
    $region17: #{tpu_custom_call.1} parent=1 // pred_fallthru
      _
    %v29 = vld [vmem:[#allocation2] sm:$0xff]
    %v30 = vld [vmem:[#allocation2 + $0x8] sm:$0xff]
    %vm31 = vcmask 261120
    %v32 = vsel %vm31, %v29, 0.0
    %33 = vadd.xlane.f32.xlu0 %v32
    %v34 = vpop.xlane.xlu0 %33
    %v35 = vsel %vm31, %v30, 0.0
    %36 = vadd.xlane.f32.xlu0 %v35
    %v37 = vpop.xlane.xlu0 %36
    %v38 = vmul.f32 %v29, %v29
    %v39 = vmul.f32 %v30, %v30
    %v40 = vsel %vm31, %v38, 0.0
    %41 = vadd.xlane.f32.xlu0 %v40
    %v42 = vpop.xlane.xlu0 %41
    %v43 = vsel %vm31, %v39, 0.0
    %44 = vadd.xlane.f32.xlu0 %v43
    %v45 = vpop.xlane.xlu0 %44
    %v46 = vmul.f32 %v34, 0.03125
    %v47 = vmul.f32 %v37, 0.03125
    %v48 = vmul.f32 %v42, 0.03125
    %v49 = vmul.f32 %v45, 0.03125
    %v50 = vmul.f32 %v46, %v46
    %v51 = vmul.f32 %v47, %v47
    %v52 = vsub.f32 %v48, %v50
    %v53 = vsub.f32 %v49, %v51
    %v54 = vmax.f32 %v52, 0.0
    %v55 = vmax.f32 %v53, 0.0
    %v56 = vadd.f32 %v54, 1e-05
    %v57 = vadd.f32 %v55, 1e-05
    %v58 = vrsqrt.pop %v56
    %v59 = vrsqrt.pop %v57
    %v60 = vsub.f32 %v29, %v46
    %v61 = vsub.f32 %v30, %v47
    %v62 = vmul.f32 %v60, %v58
    %v63 = vmul.f32 %v61, %v59
    %v64 = vld [vmem:[%s1] sm:$0x1]
    %v66 = vlaneseq
    %v67 = vshrl.u32 %v66, 7
    %v68 = vsub.s32 0, %v67
    %v69 = vrot.slane %v64, %v68
    %v71 = vmul.f32 %v62, %v69
    %v72 = vmul.f32 %v63, %v69
    %v73 = vld [vmem:[%s2] sm:$0x1]
    %v75 = vlaneseq
    %v76 = vshrl.u32 %v75, 7
    %v77 = vsub.s32 0, %v76
    %v78 = vrot.slane %v73, %v77
    %v80 = vadd.f32 %v71, %v78
    %v81 = vadd.f32 %v72, %v78
    %v82 = vround.ne.pseudo %v80
    %v83 = vround.ne.pseudo %v81
    %v84 = vmax.f32 %v82, -128.0
    %v85 = vmax.f32 %v83, -128.0
    %v86 = vmin.f32 %v84, 127.0
    %v87 = vmin.f32 %v85, 127.0
    %v88 = vtrunc.f32 %v86
    %v89 = vtrunc.f32 %v87
    %v90 = vpack.c.f32.eXmY %v88, %v89, 312
    %v94 = vpack.c.b8 %v90, %v90
    %v96 = vunpack.c.0.s8 %v94
    %v97 = vunpack.c.1.s8 %v94
    %v98 = vpack.c.b16 %v96, %v96
    %v99 = vpack.c.b8 %v98, %v98
    %v100 = vpack.c.b16 %v97, %v97
    %v101 = vpack.c.b8 %v100, %v100
    %vm102 = vcmask 254976
    %103 = vst.msk [vmem:[#allocation5] sm:$0x3] %vm102, %v99
    %104 = vst.msk [vmem:[#allocation5 + $0x2] sm:$0x3] %vm102, %v101
    // Predicated region
    $region18: #{tpu_custom_call.1} parent=1 // pred_check
      _
    $region19: #{tpu_custom_call.1} parent=1 // pred_check_branch
      %106 = sbr.rel (0) target = $region21
    $region20: #{tpu_custom_call.1} parent=1 // pred_region
      %s108 = ssub.s32 64, 64
      %109 = vsyncadd [#allocation4], %s108
      %s110 = sshll.u32 [#allocation5], 4
      %s111 = int_to_ptr.vmem [resolvable:$true] %s110
      %116 = dma.vmem_to_hbm [thread:$0]  %s111, 64, %s3, [#allocation4], 32, 32, 2
    $region21: #{tpu_custom_call.1} parent=1 // pred_fallthru
      _
    // Predicated region
    $region22: #{tpu_custom_call.1} parent=1 // pred_check
      _
    $region23: #{tpu_custom_call.1} parent=1 // pred_check_branch
      %118 = sbr.rel (0) target = $region25
    $region24: #{tpu_custom_call.1} parent=1 // pred_region
      %119 = dma.done [#allocation4], 64
    $region25: #{tpu_custom_call.1} parent=1 // pred_fallthru
      _
    %120 = vsyncpa [#allocation3], 1
    %121 = vsyncpa [#allocation4], 1

</llo_original>
